<compile_context>
chip_gen: v7x
topology: tpu7x:2x2x1
jax: 0.10.0
libtpu: 0.0.40
codegen_flags: <defaults>
</compile_context>

<pallas_src>
import functools

import jax
import jax.numpy as jnp
from jax import lax
from jax.experimental import pallas as pl
from jax.experimental.pallas import tpu as pltpu


_OUT_SUB, _OUT_LANES = 8, 128  # lane-dense, (8,128)-aligned per-step partial


def _mpkd_kernel(x_ref, w1_ref, w2_ref, sconv_ref, wst_ref, out_ref,
                 *, H, W, CT, BB):
    HW = H * W

    x = x_ref[...]                                       # (BB, C, HW) f32

    # ---- Channel attention: GAP -> FC -> ReLU -> FC -> sigmoid ----
    avg = jnp.mean(x, axis=2)                            # (BB, C)
    h1 = jnp.maximum(
        jnp.dot(avg, w1_ref[...], preferred_element_type=jnp.float32), 0.0)
    ca = jax.nn.sigmoid(
        jnp.dot(h1, w2_ref[...], preferred_element_type=jnp.float32))  # (BB, C)
    xc = x * ca[:, :, None]                              # (BB, C, HW)

    # ---- Spatial attention: mean/max over C -> KxK conv as ONE MXU matmul ----
    # The zero-padded KxK conv over the (avg|max) 2-channel map is folded into
    # a precomputed (2*HW, HW) shift-and-mask matrix (built in the wrapper),
    # so the whole 49-tap stencil is a single lane-dense matmul.
    avg_m = jnp.mean(xc, axis=1)                         # (BB, HW)
    max_m = jnp.max(xc, axis=1)                          # (BB, HW)
    maps = jnp.concatenate([avg_m, max_m], axis=1)       # (BB, 2*HW)
    conv = jnp.dot(maps, sconv_ref[...],
                   preferred_element_type=jnp.float32)   # (BB, HW)
    sa = jax.nn.sigmoid(conv)
    xs = xc * sa[:, None, :]                             # (BB, C, HW)

    # ---- Stacked teacher/student heads + per-head Gram + MSE partial ----
    # TODO(synk): ResNet20/ResNet56 backbones come from an undefined get_model();
    # replaced with deterministic 1x1-conv feature heads (Gram/MSE path is exact).
    w_st = wst_ref[...]                                  # (2*CT, C)
    w_b = jnp.broadcast_to(w_st[None, :, :], (BB,) + w_st.shape)     # (BB,2CT,C)
    f = jnp.einsum('boc,bcp->bop', w_b, xs,
                   preferred_element_type=jnp.float32)   # (BB, 2*CT, HW)
    ft = f[:, :CT, :]                                    # teacher features
    fs = f[:, CT:, :]                                    # student features
    gt = jnp.einsum('bip,bjp->bij', ft, ft, preferred_element_type=jnp.float32)
    gs = jnp.einsum('bip,bjp->bij', fs, fs, preferred_element_type=jnp.float32)
    inv_norm = 1.0 / float(CT * H * W)
    d = (gs - gt) * inv_norm                             # (BB, CT, CT)

    ssq = jnp.sum(d * d, axis=2, keepdims=True)          # (BB, CT, 1)
    ssq = jnp.sum(ssq, axis=1, keepdims=True)            # (BB, 1, 1)
    ssq = jnp.sum(ssq, axis=0)                           # (1, 1)
    # per-grid-step partial, (8,128)-aligned store; wrapper sums & normalizes
    out_ref[...] = jnp.broadcast_to(ssq.reshape(1, 1, 1), out_ref.shape)


def _build_conv_shift_matrix(w_conv, H, W):
    """Fold a zero-padded KxK 2->1-channel conv into a (2*H*W, H*W) matrix."""
    K = w_conv.shape[-1]
    P = K // 2
    HW = H * W
    pos = jnp.arange(HW)
    ry = pos // W                                        # pixel row
    rx = pos % W                                         # pixel col
    # Tap index (ky,kx) through which input pixel q feeds output pixel p:
    #   qy = py + ky - P  =>  ky = qy - py + P   (same for kx)
    ky = ry[:, None] - ry[None, :] + P                   # (HW_in, HW_out)
    kx = rx[:, None] - rx[None, :] + P
    valid = (ky >= 0) & (ky < K) & (kx >= 0) & (kx < K)
    kyc = jnp.clip(ky, 0, K - 1)
    kxc = jnp.clip(kx, 0, K - 1)
    s_avg = jnp.where(valid, w_conv[0][kyc, kxc], 0.0)   # (HW, HW)
    s_max = jnp.where(valid, w_conv[1][kyc, kxc], 0.0)   # (HW, HW)
    return jnp.concatenate([s_avg, s_max], axis=0).astype(jnp.float32)


def mpkd_dcfi_forward(x, w_fc1, w_fc2, w_conv, w_teacher, w_student,
                      *, block_b=None):
    B, C, H, W = x.shape
    HW = H * W
    CR = w_fc1.shape[0]
    CT = w_teacher.shape[0]

    if block_b is None:
        # >= 2 grid steps: input double-buffering on all chips, and megacore
        # sharding of the "parallel" axis on v7x (2 TCs/chip).
        target = max(1, B // 4)
        block_b = next(c for c in range(target, 0, -1) if B % c == 0)
    assert B % block_b == 0
    nb = B // block_b

    x_flat = x.reshape(B, C, HW).astype(jnp.float32)
    w1_t = w_fc1.T.astype(jnp.float32)                   # (C, CR)
    w2_t = w_fc2.T.astype(jnp.float32)                   # (CR, C)
    s_conv = _build_conv_shift_matrix(w_conv.astype(jnp.float32), H, W)
    w_stacked = jnp.concatenate(
        [w_teacher, w_student], axis=0).astype(jnp.float32)   # (2*CT, C)

    # Explicit VMEM budget (v7x: 64 MiB physical / 32 MiB default scoped).
    vmem_est = 4 * (4 * block_b * C * HW                 # x (2 bufs) + xc + xs
                    + 4 * block_b * max(2 * CT, 8) * HW  # f + avg/max/conv maps
                    + 4 * HW * HW                        # shift matrix (+buf)
                    + 2 * CT * C + 2 * C * CR)
    vmem_limit = int(min(100 << 20, max(32 << 20, 2 * vmem_est)))

    kernel = functools.partial(_mpkd_kernel, H=H, W=W, CT=CT, BB=block_b)
    grid_spec = pltpu.PrefetchScalarGridSpec(
        num_scalar_prefetch=0,
        grid=(nb,),
        in_specs=[
            pl.BlockSpec((block_b, C, HW), lambda i: (i, 0, 0)),
            pl.BlockSpec((C, CR), lambda i: (0, 0)),
            pl.BlockSpec((CR, C), lambda i: (0, 0)),
            pl.BlockSpec((2 * HW, HW), lambda i: (0, 0)),
            pl.BlockSpec((2 * CT, C), lambda i: (0, 0)),
        ],
        out_specs=pl.BlockSpec((1, _OUT_SUB, _OUT_LANES), lambda i: (i, 0, 0)),
    )
    out = pl.pallas_call(
        kernel,
        out_shape=jax.ShapeDtypeStruct((nb, _OUT_SUB, _OUT_LANES), jnp.float32),
        grid_spec=grid_spec,
        compiler_params=pltpu.CompilerParams(
            dimension_semantics=("parallel",),   # safe: each step owns its block
            vmem_limit_bytes=vmem_limit),
    )(x_flat, w1_t, w2_t, s_conv, w_stacked)
    return jnp.sum(out[:, 0, 0]) / float(B * CT * CT)


def reference(x, w_fc1, w_fc2, w_conv, w_teacher, w_student):
    B, C, H, W = x.shape
    CT = w_teacher.shape[0]
    K = w_conv.shape[-1]
    # channel attention
    avg = jnp.mean(x, axis=(2, 3))                       # (B, C)
    h = jax.nn.relu(avg @ w_fc1.T)
    ca = jax.nn.sigmoid(h @ w_fc2.T)
    xc = x * ca[:, :, None, None]
    # spatial attention
    avg_m = jnp.mean(xc, axis=1, keepdims=True)
    max_m = jnp.max(xc, axis=1, keepdims=True)
    sa_in = jnp.concatenate([avg_m, max_m], axis=1)
    conv = jax.lax.conv_general_dilated(
        sa_in, w_conv.reshape(1, 2, K, K),
        window_strides=(1, 1), padding=((K // 2, K // 2), (K // 2, K // 2)),
        dimension_numbers=("NCHW", "OIHW", "NCHW"))
    sa = jax.nn.sigmoid(conv)
    xs = xc * sa
    xf = xs.reshape(B, C, H * W)
    t = jnp.einsum("oc,bcp->bop", w_teacher, xf)
    s = jnp.einsum("oc,bcp->bop", w_student, xf)
    gt = jnp.einsum("bip,bjp->bij", t, t) / (CT * H * W)
    gs = jnp.einsum("bip,bjp->bij", s, s) / (CT * H * W)
    return jnp.mean((gs - gt) ** 2)


if __name__ == "__main__":
    B, C, H, W = 2, 16, 16, 16
    CR = 4          # in_channels // reduction_ratio  (reduction_ratio=4)
    K = 7           # spatial-attention kernel size
    CT = 8          # stand-in feature-head channels (teacher == student)

    key = jax.random.PRNGKey(0)
    kx, k1, k2, kc, kt, ks = jax.random.split(key, 6)
    x = jax.random.normal(kx, (B, C, H, W), jnp.float32)
    w_fc1 = jax.random.normal(k1, (CR, C), jnp.float32) * 0.2
    w_fc2 = jax.random.normal(k2, (C, CR), jnp.float32) * 0.2
    w_conv = jax.random.normal(kc, (2, K, K), jnp.float32) * 0.1
    w_teacher = jax.random.normal(kt, (CT, C), jnp.float32) * 0.2
    w_student = jax.random.normal(ks, (CT, C), jnp.float32) * 0.2

    loss = mpkd_dcfi_forward(x, w_fc1, w_fc2, w_conv, w_teacher, w_student)
    loss = jax.block_until_ready(loss)

    ref = reference(x, w_fc1, w_fc2, w_conv, w_teacher, w_student)
    assert jnp.allclose(loss, ref, rtol=1e-3, atol=1e-6), (loss, ref)
    print("KERNEL_OK")
</pallas_src>

<mosaic_0001>
module attributes {stable_mosaic.version = 11 : i64} {
  func.func @_mpkd_kernel(%arg0: i32, %arg1: memref<1x16x256xf32, #tpu.memory_space<vmem>>, %arg2: memref<16x4xf32, #tpu.memory_space<vmem>>, %arg3: memref<4x16xf32, #tpu.memory_space<vmem>>, %arg4: memref<512x256xf32, #tpu.memory_space<vmem>>, %arg5: memref<16x16xf32, #tpu.memory_space<vmem>>, %arg6: memref<1x8x128xf32, #tpu.memory_space<vmem>>) attributes {dimension_semantics = [#tpu.dimension_semantics<parallel>], iteration_bounds = array<i64: 2>, scalar_prefetch = 0 : i64, scratch_operands = 0 : i64, tpu.core_type = #tpu.core_type<tc>, window_params = [{transform_indices = @transform_0, window_bounds = array<i64: 1, 16, 256>}, {pipeline_mode = #tpu.pipeline_mode<synchronous>, transform_indices = @transform_1, window_bounds = array<i64: 16, 4>}, {pipeline_mode = #tpu.pipeline_mode<synchronous>, transform_indices = @transform_2, window_bounds = array<i64: 4, 16>}, {pipeline_mode = #tpu.pipeline_mode<synchronous>, transform_indices = @transform_3, window_bounds = array<i64: 512, 256>}, {pipeline_mode = #tpu.pipeline_mode<synchronous>, transform_indices = @transform_4, window_bounds = array<i64: 16, 16>}, {transform_indices = @transform_5, window_bounds = array<i64: 1, 8, 128>}]} {
    %c0 = arith.constant 0 : index
    %c0_0 = arith.constant 0 : index
    %c0_1 = arith.constant 0 : index
    %0 = vector.load %arg1[%c0, %c0_0, %c0_1] : memref<1x16x256xf32, #tpu.memory_space<vmem>>, vector<1x16x256xf32>
    %cst = arith.constant dense<0.000000e+00> : vector<1x16xf32>
    %1 = vector.multi_reduction <add>, %0, %cst [2] : vector<1x16x256xf32> to vector<1x16xf32>
    %cst_2 = arith.constant 2.560000e+02 : f32
    %2 = vector.broadcast %cst_2 : f32 to vector<1x16xf32>
    %3 = arith.divf %1, %2 : vector<1x16xf32>
    %c0_3 = arith.constant 0 : index
    %c0_4 = arith.constant 0 : index
    %4 = vector.load %arg2[%c0_3, %c0_4] : memref<16x4xf32, #tpu.memory_space<vmem>>, vector<16x4xf32>
    %cst_5 = arith.constant dense<0.000000e+00> : vector<1x4xf32>
    %5 = tpu.matmul %3, %4, %cst_5 {dimension_numbers = #tpu.dot_dimension_numbers<[1], [0], [0], [1], [0, 0, 1, 1], [], []>} : vector<1x16xf32>, vector<16x4xf32>, vector<1x4xf32> -> vector<1x4xf32>
    %cst_6 = arith.constant 0.000000e+00 : f32
    %6 = vector.broadcast %cst_6 : f32 to vector<1x4xf32>
    %7 = arith.maximumf %5, %6 : vector<1x4xf32>
    %c0_7 = arith.constant 0 : index
    %c0_8 = arith.constant 0 : index
    %8 = vector.load %arg3[%c0_7, %c0_8] : memref<4x16xf32, #tpu.memory_space<vmem>>, vector<4x16xf32>
    %cst_9 = arith.constant dense<0.000000e+00> : vector<1x16xf32>
    %9 = tpu.matmul %7, %8, %cst_9 {dimension_numbers = #tpu.dot_dimension_numbers<[1], [0], [0], [1], [0, 0, 1, 1], [], []>} : vector<1x4xf32>, vector<4x16xf32>, vector<1x16xf32> -> vector<1x16xf32>
    %10 = arith.negf %9 : vector<1x16xf32>
    %11 = math.exp %10 : vector<1x16xf32>
    %cst_10 = arith.constant 1.000000e+00 : f32
    %12 = vector.broadcast %cst_10 : f32 to vector<1x16xf32>
    %13 = arith.addf %12, %11 : vector<1x16xf32>
    %14 = arith.divf %12, %13 : vector<1x16xf32>
    %15 = vector.shape_cast %14 : vector<1x16xf32> to vector<1x16x1xf32>
    %16 = vector.broadcast %15 : vector<1x16x1xf32> to vector<1x16x256xf32>
    %17 = arith.mulf %0, %16 : vector<1x16x256xf32>
    %cst_11 = arith.constant dense<0.000000e+00> : vector<1x256xf32>
    %18 = vector.multi_reduction <add>, %17, %cst_11 [1] : vector<1x16x256xf32> to vector<1x256xf32>
    %cst_12 = arith.constant 1.600000e+01 : f32
    %19 = vector.broadcast %cst_12 : f32 to vector<1x256xf32>
    %20 = arith.divf %18, %19 : vector<1x256xf32>
    %cst_13 = arith.constant dense<0xFF800000> : vector<1x256xf32>
    %21 = vector.multi_reduction <maximumf>, %17, %cst_13 [1] : vector<1x16x256xf32> to vector<1x256xf32>
    %22 = tpu.concatenate %20, %21 in 1 : vector<1x256xf32>, vector<1x256xf32> -> vector<1x512xf32>
    %c0_14 = arith.constant 0 : index
    %c0_15 = arith.constant 0 : index
    %23 = vector.load %arg4[%c0_14, %c0_15] : memref<512x256xf32, #tpu.memory_space<vmem>>, vector<512x256xf32>
    %cst_16 = arith.constant dense<0.000000e+00> : vector<1x256xf32>
    %24 = tpu.matmul %22, %23, %cst_16 {dimension_numbers = #tpu.dot_dimension_numbers<[1], [0], [0], [1], [0, 0, 1, 1], [], []>} : vector<1x512xf32>, vector<512x256xf32>, vector<1x256xf32> -> vector<1x256xf32>
    %25 = arith.negf %24 : vector<1x256xf32>
    %26 = math.exp %25 : vector<1x256xf32>
    %cst_17 = arith.constant 1.000000e+00 : f32
    %27 = vector.broadcast %cst_17 : f32 to vector<1x256xf32>
    %28 = arith.addf %27, %26 : vector<1x256xf32>
    %29 = arith.divf %27, %28 : vector<1x256xf32>
    %30 = vector.shape_cast %29 : vector<1x256xf32> to vector<1x1x256xf32>
    %31 = vector.broadcast %30 : vector<1x1x256xf32> to vector<1x16x256xf32>
    %32 = arith.mulf %17, %31 : vector<1x16x256xf32>
    %c0_18 = arith.constant 0 : index
    %c0_19 = arith.constant 0 : index
    %33 = vector.load %arg5[%c0_18, %c0_19] : memref<16x16xf32, #tpu.memory_space<vmem>>, vector<16x16xf32>
    %34 = vector.shape_cast %33 : vector<16x16xf32> to vector<1x16x16xf32>
    "tpu.trace_start"() <{level = 10 : i32, message = "boc,bcp->bop"}> : () -> ()
    %cst_20 = arith.constant dense<0.000000e+00> : vector<1x16x256xf32>
    %35 = tpu.matmul %34, %32, %cst_20 {dimension_numbers = #tpu.dot_dimension_numbers<[2], [1], [1], [2], [0, 0, 0, 1, 1, 2], [0], [0]>} : vector<1x16x16xf32>, vector<1x16x256xf32>, vector<1x16x256xf32> -> vector<1x16x256xf32>
    "tpu.trace_stop"() : () -> ()
    %36 = vector.extract_strided_slice %35 {offsets = [0, 0, 0], sizes = [1, 8, 256], strides = [1, 1, 1]} : vector<1x16x256xf32> to vector<1x8x256xf32>
    %37 = vector.extract_strided_slice %35 {offsets = [0, 8, 0], sizes = [1, 8, 256], strides = [1, 1, 1]} : vector<1x16x256xf32> to vector<1x8x256xf32>
    "tpu.trace_start"() <{level = 10 : i32, message = "bip,bjp->bij"}> : () -> ()
    %cst_21 = arith.constant dense<0.000000e+00> : vector<1x8x8xf32>
    %38 = tpu.matmul %36, %36, %cst_21 {dimension_numbers = #tpu.dot_dimension_numbers<[2], [2], [1], [1], [0, 0, 0, 1, 1, 1], [0], [0]>} : vector<1x8x256xf32>, vector<1x8x256xf32>, vector<1x8x8xf32> -> vector<1x8x8xf32>
    %cst_22 = arith.constant dense<0.000000e+00> : vector<1x8x8xf32>
    %39 = tpu.matmul %37, %37, %cst_22 {dimension_numbers = #tpu.dot_dimension_numbers<[2], [2], [1], [1], [0, 0, 0, 1, 1, 1], [0], [0]>} : vector<1x8x256xf32>, vector<1x8x256xf32>, vector<1x8x8xf32> -> vector<1x8x8xf32>
    "tpu.trace_stop"() : () -> ()
    %40 = arith.subf %39, %38 : vector<1x8x8xf32>
    %cst_23 = arith.constant 4.8828125E-4 : f32
    %41 = vector.broadcast %cst_23 : f32 to vector<1x8x8xf32>
    %42 = arith.mulf %40, %41 : vector<1x8x8xf32>
    %43 = arith.mulf %42, %42 : vector<1x8x8xf32>
    %cst_24 = arith.constant dense<0.000000e+00> : vector<1x8xf32>
    %44 = vector.multi_reduction <add>, %43, %cst_24 [2] : vector<1x8x8xf32> to vector<1x8xf32>
    %45 = vector.shape_cast %44 : vector<1x8xf32> to vector<1x8x1xf32>
    %cst_25 = arith.constant dense<0.000000e+00> : vector<1x1xf32>
    %46 = vector.multi_reduction <add>, %45, %cst_25 [1] : vector<1x8x1xf32> to vector<1x1xf32>
    %47 = vector.shape_cast %46 : vector<1x1xf32> to vector<1x1x1xf32>
    %cst_26 = arith.constant dense<0.000000e+00> : vector<1x1xf32>
    %48 = vector.multi_reduction <add>, %47, %cst_26 [0] : vector<1x1x1xf32> to vector<1x1xf32>
    %49 = vector.shape_cast %48 : vector<1x1xf32> to vector<1x1x1xf32>
    %50 = vector.shape_cast %49 : vector<1x1x1xf32> to vector<1x1x1xf32>
    %51 = vector.broadcast %50 : vector<1x1x1xf32> to vector<1x8x128xf32>
    %c0_27 = arith.constant 0 : index
    %c0_28 = arith.constant 0 : index
    %c0_29 = arith.constant 0 : index
    %52 = vector.load %arg6[%c0_27, %c0_28, %c0_29] : memref<1x8x128xf32, #tpu.memory_space<vmem>>, vector<1x8x128xf32>
    tpu.vector_store %arg6[%c0_27, %c0_28, %c0_29], %51 {strides = array<i32>} : memref<1x8x128xf32, #tpu.memory_space<vmem>>, vector<1x8x128xf32>,
    return
  }
  func.func @transform_0(%arg0: i32) -> (i32, i32, i32) {
    %c0_i32 = arith.constant 0 : i32
    %c0_i32_0 = arith.constant 0 : i32
    %c0_i32_1 = arith.constant 0 : i32
    return %arg0, %c0_i32, %c0_i32_0 : i32, i32, i32
  }
  func.func @transform_1(%arg0: i32) -> (i32, i32) {
    %c0_i32 = arith.constant 0 : i32
    %c0_i32_0 = arith.constant 0 : i32
    %c0_i32_1 = arith.constant 0 : i32
    return %c0_i32, %c0_i32_0 : i32, i32
  }
  func.func @transform_2(%arg0: i32) -> (i32, i32) {
    %c0_i32 = arith.constant 0 : i32
    %c0_i32_0 = arith.constant 0 : i32
    %c0_i32_1 = arith.constant 0 : i32
    return %c0_i32, %c0_i32_0 : i32, i32
  }
  func.func @transform_3(%arg0: i32) -> (i32, i32) {
    %c0_i32 = arith.constant 0 : i32
    %c0_i32_0 = arith.constant 0 : i32
    %c0_i32_1 = arith.constant 0 : i32
    return %c0_i32, %c0_i32_0 : i32, i32
  }
  func.func @transform_4(%arg0: i32) -> (i32, i32) {
    %c0_i32 = arith.constant 0 : i32
    %c0_i32_0 = arith.constant 0 : i32
    %c0_i32_1 = arith.constant 0 : i32
    return %c0_i32, %c0_i32_0 : i32, i32
  }
  func.func @transform_5(%arg0: i32) -> (i32, i32, i32) {
    %c0_i32 = arith.constant 0 : i32
    %c0_i32_0 = arith.constant 0 : i32
    %c0_i32_1 = arith.constant 0 : i32
    return %arg0, %c0_i32, %c0_i32_0 : i32, i32, i32
  }
}

</mosaic_0001>

<llo_original>
// kernel: tpu_custom_call.1
$region0: #{tpu_custom_call.1}
  #allocation0 [shape = 'u32[]', space=smem, size = 0x4, offset = 0x4, fixed_abs, tag = 'smem constant byte address 0x4 - core index']
  #allocation1 [shape = 'u32[144,128]{1,0:T(1,128)}', space=vmem, size = 0x12000, scoped, tag = 'internal scratch']
  %s0 = inlined_call_operand.hbm [shape: f32[2,16,256], index: 0, kind: input, shape index: {}]
  %s1 = inlined_call_operand.vmem [shape: f32[16,4], index: 1, kind: input, shape index: {}]
  %s2 = inlined_call_operand.vmem [shape: f32[4,16], index: 2, kind: input, shape index: {}]
  %s3 = inlined_call_operand.hbm [shape: f32[512,256], index: 3, kind: input, shape index: {}]
  %s4 = inlined_call_operand.vmem [shape: f32[16,16], index: 4, kind: input, shape index: {}]
  %s5 = inlined_call_operand.hbm [shape: f32[2,8,128], index: 5, kind: output, shape index: {}]
  %s6 = sld [smem:[#allocation0]]
  $region61: #{tpu_custom_call.1} parent=0
    _
  %s8 = ssub.s32 1, %s6
  %s9 = scalar_select 0, %s8, %s6
  $region1: #{tpu_custom_call.1} parent=0
    #allocation2 [shape = 'u8[32768]{0}', space=vmem, size = 0x8000, scoped, tag = 'input window, operand 0']
    #allocation3 [shape = 's32[2]{0}', space=sflag, size = 0x8, scoped, tag = 'scoped memory for tpu_custom_call.1']
    #allocation4 [shape = 's32[2]{0}', space=sflag, size = 0x8, scoped, tag = 'scoped memory for tpu_custom_call.1']
    #allocation5 [shape = 'u8[524288]{0}', space=vmem, size = 0x80000, scoped, tag = 'input window, operand 3, single buffered']
    #allocation6 [shape = 's32[1]{0}', space=sflag, size = 0x4, scoped, tag = 'scoped memory for tpu_custom_call.1']
    #allocation7 [shape = 'u8[8192]{0}', space=vmem, size = 0x2000, scoped, tag = 'output window, operand 0']
    %10 = vsyncpa [#allocation3], 0
    %s11 = scalar_lea.sflag [#allocation3], 1
    %12 = vsyncpa %s11, 0
    %13 = vsyncpa [#allocation6], 0
    %14 = vsyncpa [#allocation4], 0
    %s15 = scalar_lea.sflag [#allocation4], 1
    %16 = vsyncpa %s15, 0
    loop: start=0, step=1, limit=4
    $region2: #{tpu_custom_call.1} parent=1 // loop_pre_header
      _
    $region3: #{tpu_custom_call.1} parent=1 // loop_header
      %s18 = sphi 0, %s22
      %p19 = scmp.ge.s32.totalorder %s18, 4
      %s28 = sphi 0, %s30
      %s31 = sphi 0, %s28
      %s32 = sphi 0, %s31
      %s48 = sphi 0, %s32
      %s52 = sphi 0, %s52
      %s54 = sphi 0, %s52
      %s55 = sphi 0, %s54
      %s69 = sphi 0, %s55
      %s73 = sphi 0, %s73
      %s75 = sphi 0, %s73
      %s76 = sphi 0, %s75
      %s90 = sphi 0, %s76
      %s94 = sphi 0, %s94
      %s96 = sphi 0, %s94
      %s97 = sphi 0, %s96
      %s111 = sphi 0, %s97
      %s115 = sphi 0, %s115
      %s117 = sphi 0, %s115
      %s118 = sphi 0, %s117
      %s132 = sphi 0, %s118
      %s138 = sphi 0, %s140
      %s141 = sphi 0, %s138
      %s142 = sphi 0, %s141
      %s158 = sphi 0, %s142
    $region4: #{tpu_custom_call.1} parent=1 // loop_header_branch
      %21 = sbr.rel (%p19) target = $region8
    $region5: #{tpu_custom_call.1} parent=1 // loop_body
      %s23 = ssub.s32 %s18, 1
      %s24 = ssub.s32 %s18, 2
      %s25 = sadd.s32 %s18, 1
      %s26 = ssub.s32 %s18, %s25
      %p27 = scmp.eq.s32.totalorder %s26, 0
      %s29 = sadd.s32 %s28, 1
      %s30 = scalar_select %p27, %s28, %s29
      %p33 = pneg %p27
      %p34 = scmp.eq.s32.totalorder %s18, 1
      %p35 = por %p33, %p34
      %p36 = scmp.ne.s32.totalorder %s28, %s31
      %p37 = scmp.eq.s32.totalorder %s18, 0
      %p38 = por %p36, %p37
      %p39 = scmp.ne.s32.totalorder %s28, %s31
      %p40 = scmp.eq.s32.totalorder %s23, 1
      %p41 = por %p39, %p40
      %p42 = scmp.ne.s32.totalorder %s31, %s32
      %p43 = scmp.eq.s32.totalorder %s23, 0
      %p44 = por %p42, %p43
      %p45 = scmp.ne.s32.totalorder %s31, %s32
      %p46 = scmp.eq.s32.totalorder %s24, 1
      %p47 = por %p45, %p46
      %p49 = scmp.ne.s32.totalorder %s32, %s48
      %p50 = scmp.eq.s32.totalorder %s24, 0
      %p51 = por %p49, %p50
      %s53 = sadd.s32 %s52, 1
      %p56 = scmp.eq.s32.totalorder %s18, 1
      %p57 = scmp.ne.s32.totalorder %s52, %s54
      %p58 = scmp.eq.s32.totalorder %s18, 0
      %p59 = por %p57, %p58
      %p60 = scmp.ne.s32.totalorder %s52, %s54
      %p61 = scmp.eq.s32.totalorder %s23, 1
      %p62 = por %p60, %p61
      %p63 = scmp.ne.s32.totalorder %s54, %s55
      %p64 = scmp.eq.s32.totalorder %s23, 0
      %p65 = por %p63, %p64
      %p66 = scmp.ne.s32.totalorder %s54, %s55
      %p67 = scmp.eq.s32.totalorder %s24, 1
      %p68 = por %p66, %p67
      %p70 = scmp.ne.s32.totalorder %s55, %s69
      %p71 = scmp.eq.s32.totalorder %s24, 0
      %p72 = por %p70, %p71
      %s74 = sadd.s32 %s73, 1
      %p77 = scmp.eq.s32.totalorder %s18, 1
      %p78 = scmp.ne.s32.totalorder %s73, %s75
      %p79 = scmp.eq.s32.totalorder %s18, 0
      %p80 = por %p78, %p79
      %p81 = scmp.ne.s32.totalorder %s73, %s75
      %p82 = scmp.eq.s32.totalorder %s23, 1
      %p83 = por %p81, %p82
      %p84 = scmp.ne.s32.totalorder %s75, %s76
      %p85 = scmp.eq.s32.totalorder %s23, 0
      %p86 = por %p84, %p85
      %p87 = scmp.ne.s32.totalorder %s75, %s76
      %p88 = scmp.eq.s32.totalorder %s24, 1
      %p89 = por %p87, %p88
      %p91 = scmp.ne.s32.totalorder %s76, %s90
      %p92 = scmp.eq.s32.totalorder %s24, 0
      %p93 = por %p91, %p92
      %s95 = sadd.s32 %s94, 1
      %p98 = scmp.eq.s32.totalorder %s18, 1
      %p99 = scmp.ne.s32.totalorder %s94, %s96
      %p100 = scmp.eq.s32.totalorder %s18, 0
      %p101 = por %p99, %p100
      %p102 = scmp.ne.s32.totalorder %s94, %s96
      %p103 = scmp.eq.s32.totalorder %s23, 1
      %p104 = por %p102, %p103
      %p105 = scmp.ne.s32.totalorder %s96, %s97
      %p106 = scmp.eq.s32.totalorder %s23, 0
      %p107 = por %p105, %p106
      %p108 = scmp.ne.s32.totalorder %s96, %s97
      %p109 = scmp.eq.s32.totalorder %s24, 1
      %p110 = por %p108, %p109
      %p112 = scmp.ne.s32.totalorder %s97, %s111
      %p113 = scmp.eq.s32.totalorder %s24, 0
      %p114 = por %p112, %p113
      %s116 = sadd.s32 %s115, 1
      %p119 = scmp.eq.s32.totalorder %s18, 1
      %p120 = scmp.ne.s32.totalorder %s115, %s117
      %p121 = scmp.eq.s32.totalorder %s18, 0
      %p122 = por %p120, %p121
      %p123 = scmp.ne.s32.totalorder %s115, %s117
      %p124 = scmp.eq.s32.totalorder %s23, 1
      %p125 = por %p123, %p124
      %p126 = scmp.ne.s32.totalorder %s117, %s118
      %p127 = scmp.eq.s32.totalorder %s23, 0
      %p128 = por %p126, %p127
      %p129 = scmp.ne.s32.totalorder %s117, %s118
      %p130 = scmp.eq.s32.totalorder %s24, 1
      %p131 = por %p129, %p130
      %p133 = scmp.ne.s32.totalorder %s118, %s132
      %p134 = scmp.eq.s32.totalorder %s24, 0
      %p135 = por %p133, %p134
      %s136 = ssub.s32 %s18, %s25
      %p137 = scmp.eq.s32.totalorder %s136, 0
      %s139 = sadd.s32 %s138, 1
      %s140 = scalar_select %p137, %s138, %s139
      %p143 = pneg %p137
      %p144 = scmp.eq.s32.totalorder %s18, 1
      %p145 = por %p143, %p144
      %p146 = scmp.ne.s32.totalorder %s138, %s141
      %p147 = scmp.eq.s32.totalorder %s18, 0
      %p148 = por %p146, %p147
      %p149 = scmp.ne.s32.totalorder %s138, %s141
      %p150 = scmp.eq.s32.totalorder %s23, 1
      %p151 = por %p149, %p150
      %p152 = scmp.ne.s32.totalorder %s141, %s142
      %p153 = scmp.eq.s32.totalorder %s23, 0
      %p154 = por %p152, %p153
      %p155 = scmp.ne.s32.totalorder %s141, %s142
      %p156 = scmp.eq.s32.totalorder %s24, 1
      %p157 = por %p155, %p156
      %p159 = scmp.ne.s32.totalorder %s142, %s158
      %p160 = scmp.eq.s32.totalorder %s24, 0
      %p161 = por %p159, %p160
      %p162 = scmp.le.s32.totalorder 1, %s18
      %p163 = scmp.lt.s32.totalorder %s18, 3
      %p164 = pnand %p162, %p163
      %p165 = pneg %p164
      // Predicated region
      $region9: #{tpu_custom_call.1} parent=5 // pred_check
        _
      $region10: #{tpu_custom_call.1} parent=5 // pred_check_branch
        %167 = sbr.rel (%p164) target = $region12
      $region11: #{tpu_custom_call.1} parent=5 // pred_region
        %s168 = ssub.s32 %s18, 1
        // Predicated region
        $region13: #{tpu_custom_call.1} parent=11 // pred_check
          %p169 = pneg %p65
        $region14: #{tpu_custom_call.1} parent=11 // pred_check_branch
          %171 = sbr.rel (%p169) target = $region16
        $region15: #{tpu_custom_call.1} parent=11 // pred_region
          _
        $region16: #{tpu_custom_call.1} parent=11 // pred_fallthru
          _
        // Predicated region
        $region17: #{tpu_custom_call.1} parent=11 // pred_check
          %p172 = pneg %p86
        $region18: #{tpu_custom_call.1} parent=11 // pred_check_branch
          %174 = sbr.rel (%p172) target = $region20
        $region19: #{tpu_custom_call.1} parent=11 // pred_region
          _
        $region20: #{tpu_custom_call.1} parent=11 // pred_fallthru
          _
        // Predicated region
        $region21: #{tpu_custom_call.1} parent=11 // pred_check
          %p175 = pneg %p107
        $region22: #{tpu_custom_call.1} parent=11 // pred_check_branch
          %177 = sbr.rel (%p175) target = $region24
        $region23: #{tpu_custom_call.1} parent=11 // pred_region
          %s179 = ssub.s32 16384, 16384
          %180 = vsyncadd [#allocation6], %s179
          %s181 = sshll.u32 [#allocation5], 4
          %s182 = int_to_ptr.vmem [resolvable:$true] %s181
          %187 = dma.hbm_to_vmem [thread:$0]  %s3, 16384, %s182, [#allocation6], 256, 256, 16
        $region24: #{tpu_custom_call.1} parent=11 // pred_fallthru
          _
        // Predicated region
        $region25: #{tpu_custom_call.1} parent=11 // pred_check
          %p188 = pneg %p128
        $region26: #{tpu_custom_call.1} parent=11 // pred_check_branch
          %190 = sbr.rel (%p188) target = $region28
        $region27: #{tpu_custom_call.1} parent=11 // pred_region
          _
        $region28: #{tpu_custom_call.1} parent=11 // pred_fallthru
          _
      $region12: #{tpu_custom_call.1} parent=5 // pred_fallthru
        _
      %p191 = scmp.lt.s32.totalorder %s18, 2
      // Predicated region
      $region29: #{tpu_custom_call.1} parent=5 // pred_check
        %p192 = pneg %p191
      $region30: #{tpu_custom_call.1} parent=5 // pred_check_branch
        %194 = sbr.rel (%p192) target = $region32
      $region31: #{tpu_custom_call.1} parent=5 // pred_region
        // Predicated region
        $region33: #{tpu_custom_call.1} parent=31 // pred_check
          %p195 = pneg %p38
        $region34: #{tpu_custom_call.1} parent=31 // pred_check_branch
          %197 = sbr.rel (%p195) target = $region36
        $region35: #{tpu_custom_call.1} parent=31 // pred_region
          %s198 = sand.u32 %s28, 1
          %s199 = scalar_lea.sflag [#allocation3], %s198
          %s200 = sand.u32 %s28, 1
          %s201 = smul.addr %s200, 32
          %s202 = scalar_lea.vmem [#allocation2], %s201
          %s204 = ssub.s32 512, 512
          %205 = vsyncadd %s199, %s204
          %s206 = smul.addr %s18, 4
          %s207 = smul.addr %s206, 128
          %s208 = scalar_lea.hbm %s0, %s207
          %s209 = sshll.u32 %s202, 4
          %s210 = int_to_ptr.vmem [resolvable:$true] %s209
          %215 = dma.hbm_to_vmem [thread:$0]  %s208, 512, %s210, %s199, 256, 256, 16
        $region36: #{tpu_custom_call.1} parent=31 // pred_fallthru
          _
      $region32: #{tpu_custom_call.1} parent=5 // pred_fallthru
        _
      %p216 = scmp.le.s32.totalorder 1, %s18
      %p217 = scmp.lt.s32.totalorder %s18, 3
      %p218 = pnand %p216, %p217
      %p219 = pneg %p218
      // Predicated region
      $region37: #{tpu_custom_call.1} parent=5 // pred_check
        _
      $region38: #{tpu_custom_call.1} parent=5 // pred_check_branch
        %221 = sbr.rel (%p218) target = $region40
      $region39: #{tpu_custom_call.1} parent=5 // pred_region
        %s222 = ssub.s32 %s18, 1
        %s223 = sand.u32 %s31, 1
        %s224 = scalar_lea.sflag [#allocation3], %s223
        %s225 = sand.u32 %s31, 1
        %s226 = smul.addr %s225, 32
        %s227 = scalar_lea.vmem [#allocation2], %s226
        // Predicated region
        $region41: #{tpu_custom_call.1} parent=39 // pred_check
          %p228 = pneg %p44
        $region42: #{tpu_custom_call.1} parent=39 // pred_check_branch
          %230 = sbr.rel (%p228) target = $region44
        $region43: #{tpu_custom_call.1} parent=39 // pred_region
          %231 = dma.done %s224, 512
        $region44: #{tpu_custom_call.1} parent=39 // pred_fallthru
          _
        // Predicated region
        $region45: #{tpu_custom_call.1} parent=39 // pred_check
          %p232 = pneg %p107
        $region46: #{tpu_custom_call.1} parent=39 // pred_check_branch
          %234 = sbr.rel (%p232) target = $region48
        $region47: #{tpu_custom_call.1} parent=39 // pred_region
          %235 = dma.done [#allocation6], 16384
        $region48: #{tpu_custom_call.1} parent=39 // pred_fallthru
          _
        %s236 = sand.u32 %s31, 1
        %s237 = scalar_lea.sflag [#allocation3], %s236
        %s238 = sand.u32 %s31, 1
        %s239 = smul.addr %s238, 32
        %s240 = scalar_lea.vmem [#allocation2], %s239
        %p241 = pneg %p44
        %p242 = pneg %p41
        %p243 = pneg %p65
        %p244 = pneg %p62
        %p245 = pneg %p86
        %p246 = pneg %p83
        %p247 = pneg %p107
        %p248 = pneg %p104
        %p249 = pneg %p128
        %p250 = pneg %p125
        %p251 = pneg %p154
        %p252 = pneg %p151
        %s253 = sand.u32 %s141, 1
        %s254 = scalar_lea.sflag [#allocation4], %s253
        %s255 = sand.u32 %s141, 1
        %s256 = smul.addr %s255, 8
        %s257 = scalar_lea.vmem [#allocation7], %s256
        %v258 = vld [vmem:[%s227] sm:$0xff]
        %v259 = vld [vmem:[%s227 + $0x8] sm:$0xff]
        %v260 = vld [vmem:[%s227 + $0x10] sm:$0xff]
        %v261 = vld [vmem:[%s227 + $0x18] sm:$0xff]
        %v262 = vadd.f32 %v258, %v259
        %263 = vadd.xlane.f32.xlu0 %v262
        %v264 = vpop.xlane.xlu0 %263
        %v265 = vadd.f32 %v260, %v261
        %266 = vadd.xlane.f32.xlu0 %v265
        %v267 = vpop.xlane.xlu0 %266
        %v268 = vrcp.pop 256.0
        %v269 = vmul.f32 %v264, %v268
        %v270 = vmul.f32 %v267, %v268
        %v271 = vld [vmem:[%s1] sm:$0xff]
        %v272 = vld [vmem:[%s1 + $0x8] sm:$0xff]
        %v275 = vlaneseq
        %v276 = vand.u32 %v275, 127
        %v277 = vlaneseq
        %v278 = vshrl.u32 %v277, 7
        %v279 = vsub.s32 %v276, %v278
        %v280 = vrot.slane %v269, %v279
        %v281 = vadd.s32 %v276, 4294967288
        %v282 = vlaneseq
        %v283 = vshrl.u32 %v282, 7
        %v284 = vsub.s32 %v281, %v283
        %v285 = vrot.slane %v270, %v284
        %vm286 = vcmask 130112
        %v287 = vsel %vm286, %v285, %v280
        %vm288 = vcmask 130048
        %v289 = vsel %vm288, %v287, 0
        %291 = vmatprep.subr.mxu0 0.0
        %292 = vmatpush1.msra.mxu0 %v271
        %293 = vmatprep.subr.mxu0 0.0
        %294 = vmatpush1.msra.mxu0 %v272
        %295 = vmatprep.subr.mxu0 0.0
        %296 = vmatpush1.msra.mxu0 0.0
        %297 = vmatprep.subr.mxu0 0.0
        %298 = vmatpush1.msra.mxu0 0.0
        %299 = vmatprep.subr.mxu0 0.0
        %300 = vmatpush1.msra.mxu0 0.0
        %301 = vmatprep.subr.mxu0 0.0
        %302 = vmatpush1.msra.mxu0 0.0
        %303 = vmatprep.subr.mxu0 0.0
        %304 = vmatpush1.msra.mxu0 0.0
        %305 = vmatprep.subr.mxu0 0.0
        %306 = vmatpush1.msra.mxu0 0.0
        %307 = vmatprep.subr.mxu0 0.0
        %308 = vmatpush1.msra.mxu0 0.0
        %309 = vmatprep.subr.mxu0 0.0
        %310 = vmatpush1.msra.mxu0 0.0
        %311 = vmatprep.subr.mxu0 0.0
        %312 = vmatpush1.msra.mxu0 0.0
        %313 = vmatprep.subr.mxu0 0.0
        %314 = vmatpush1.msra.mxu0 0.0
        %315 = vmatprep.subr.mxu0 0.0
        %316 = vmatpush1.msra.mxu0 0.0
        %317 = vmatprep.subr.mxu0 0.0
        %318 = vmatpush1.msra.mxu0 0.0
        %319 = vmatprep.subr.mxu0 0.0
        %320 = vmatpush1.msra.mxu0 0.0
        %321 = vmatprep.subr.mxu0 0.0
        %322 = vmatpush1.msra.mxu0 0.0
        %323 = vmatprep.subr.mxu0 0.0
        %324 = vmatpush1.msra.mxu0 0.0
        %325 = vmatprep.subr.mxu0 0.0
        %326 = vmatpush1.msra.mxu0 0.0
        %327 = vmatprep.subr.mxu0 0.0
        %328 = vmatpush1.msra.mxu0 0.0
        %329 = vmatprep.subr.mxu0 0.0
        %330 = vmatpush1.msra.mxu0 0.0
        %331 = vmatprep.subr.mxu0 0.0
        %332 = vmatpush1.msra.mxu0 0.0
        %333 = vmatprep.subr.mxu0 0.0
        %334 = vmatpush1.msra.mxu0 0.0
        %335 = vmatprep.subr.mxu0 0.0
        %336 = vmatpush1.msra.mxu0 0.0
        %337 = vmatprep.subr.mxu0 0.0
        %338 = vmatpush1.msra.mxu0 0.0
        %339 = vmatprep.subr.mxu0 0.0
        %340 = vmatpush1.msra.mxu0 0.0
        %341 = vmatprep.subr.mxu0 0.0
        %342 = vmatpush1.msra.mxu0 0.0
        %343 = vmatprep.subr.mxu0 0.0
        %344 = vmatpush1.msra.mxu0 0.0
        %345 = vmatprep.subr.mxu0 0.0
        %346 = vmatpush1.msra.mxu0 0.0
        %347 = vmatprep.subr.mxu0 0.0
        %348 = vmatpush1.msra.mxu0 0.0
        %349 = vmatprep.subr.mxu0 0.0
        %350 = vmatpush1.msra.mxu0 0.0
        %351 = vmatprep.subr.mxu0 0.0
        %352 = vmatpush1.msra.mxu0 0.0
        %353 = vmatprep.subr.mxu0 0.0
        %354 = vmatpush1.msra.mxu0 0.0
        %355 = vmatprep.mubr.f32.mxu0 0.0
        %356 = vmatmul.mubr.f32.gmra.mrb[0].mxu0 %v289
        %v357 = vpop.f32.mrb[0].mxu0
        %v358 = vadd.f32 0.0, %v357
        %v359 = vpop.f32.mrb[0].mxu0
        %360 = vdwg.mxu0
        %v361 = vmax.f32 %v358, 0.0
        %v362 = vld [vmem:[%s2] sm:$0xf]
        %vm363 = vcmask 31744
        %v365 = vsel %vm363, %v361, 0
        %vm367 = vcmask 1043456
        %v369 = vsel %vm367, %v362, 0
        %371 = vmatprep.subr.mxu0 0.0
        %372 = vmatpush1.msra.mxu0 %v369
        %373 = vmatprep.subr.mxu0 0.0
        %374 = vmatpush1.msra.mxu0 0.0
        %375 = vmatprep.subr.mxu0 0.0
        %376 = vmatpush1.msra.mxu0 0.0
        %377 = vmatprep.subr.mxu0 0.0
        %378 = vmatpush1.msra.mxu0 0.0
        %379 = vmatprep.subr.mxu0 0.0
        %380 = vmatpush1.msra.mxu0 0.0
        %381 = vmatprep.subr.mxu0 0.0
        %382 = vmatpush1.msra.mxu0 0.0
        %383 = vmatprep.subr.mxu0 0.0
        %384 = vmatpush1.msra.mxu0 0.0
        %385 = vmatprep.subr.mxu0 0.0
        %386 = vmatpush1.msra.mxu0 0.0
        %387 = vmatprep.subr.mxu0 0.0
        %388 = vmatpush1.msra.mxu0 0.0
        %389 = vmatprep.subr.mxu0 0.0
        %390 = vmatpush1.msra.mxu0 0.0
        %391 = vmatprep.subr.mxu0 0.0
        %392 = vmatpush1.msra.mxu0 0.0
        %393 = vmatprep.subr.mxu0 0.0
        %394 = vmatpush1.msra.mxu0 0.0
        %395 = vmatprep.subr.mxu0 0.0
        %396 = vmatpush1.msra.mxu0 0.0
        %397 = vmatprep.subr.mxu0 0.0
        %398 = vmatpush1.msra.mxu0 0.0
        %399 = vmatprep.subr.mxu0 0.0
        %400 = vmatpush1.msra.mxu0 0.0
        %401 = vmatprep.subr.mxu0 0.0
        %402 = vmatpush1.msra.mxu0 0.0
        %403 = vmatprep.subr.mxu0 0.0
        %404 = vmatpush1.msra.mxu0 0.0
        %405 = vmatprep.subr.mxu0 0.0
        %406 = vmatpush1.msra.mxu0 0.0
        %407 = vmatprep.subr.mxu0 0.0
        %408 = vmatpush1.msra.mxu0 0.0
        %409 = vmatprep.subr.mxu0 0.0
        %410 = vmatpush1.msra.mxu0 0.0
        %411 = vmatprep.subr.mxu0 0.0
        %412 = vmatpush1.msra.mxu0 0.0
        %413 = vmatprep.subr.mxu0 0.0
        %414 = vmatpush1.msra.mxu0 0.0
        %415 = vmatprep.subr.mxu0 0.0
        %416 = vmatpush1.msra.mxu0 0.0
        %417 = vmatprep.subr.mxu0 0.0
        %418 = vmatpush1.msra.mxu0 0.0
        %419 = vmatprep.subr.mxu0 0.0
        %420 = vmatpush1.msra.mxu0 0.0
        %421 = vmatprep.subr.mxu0 0.0
        %422 = vmatpush1.msra.mxu0 0.0
        %423 = vmatprep.subr.mxu0 0.0
        %424 = vmatpush1.msra.mxu0 0.0
        %425 = vmatprep.subr.mxu0 0.0
        %426 = vmatpush1.msra.mxu0 0.0
        %427 = vmatprep.subr.mxu0 0.0
        %428 = vmatpush1.msra.mxu0 0.0
        %429 = vmatprep.subr.mxu0 0.0
        %430 = vmatpush1.msra.mxu0 0.0
        %431 = vmatprep.subr.mxu0 0.0
        %432 = vmatpush1.msra.mxu0 0.0
        %433 = vmatprep.subr.mxu0 0.0
        %434 = vmatpush1.msra.mxu0 0.0
        %435 = vmatprep.mubr.f32.mxu0 0.0
        %436 = vmatmul.mubr.f32.gmra.mrb[0].mxu0 %v365
        %v437 = vpop.f32.mrb[0].mxu0
        %v438 = vadd.f32 0.0, %v437
        %v439 = vpop.f32.mrb[0].mxu0
        %440 = vdwg.mxu0
        %v441 = vxor.u32 %v438, 2147483648
        %v442 = vmul.f32 %v441, 1.442695
        %v443 = vpow.pop %v442
        %v444 = vadd.f32 %v443, 1.0
        %v445 = vrcp.pop %v444
        %v446 = vmul.f32 1.0, %v445
        %v447 = vlaneseq
        %v448 = vshrl.u32 %v447, 7
        %v449 = vsub.s32 0, %v448
        %v450 = vrot.slane %v446, %v449
        %452 = vbcast.lane.b32.xlu0 %v450, 256
        %v453 = vpop.permute.xlu0 %452
        %s455 = sor.u32 256, 8
        %456 = vbcast.lane.b32.xlu0 %v450, %s455
        %v457 = vpop.permute.xlu0 %456
        %v458 = vmul.f32 %v258, %v453
        %v459 = vmul.f32 %v259, %v453
        %v460 = vmul.f32 %v260, %v457
        %v461 = vmul.f32 %v261, %v457
        %v462 = vadd.f32 %v458, %v460
        %v463 = vrot.slane %v462, 4
        %v464 = vadd.f32 %v462, %v463
        %v465 = vrot.slane %v464, 2
        %v466 = vadd.f32 %v464, %v465
        %v467 = vrot.slane %v466, 1
        %v468 = vadd.f32 %v466, %v467
        %v469 = vadd.f32 %v459, %v461
        %v470 = vrot.slane %v469, 4
        %v471 = vadd.f32 %v469, %v470
        %v472 = vrot.slane %v471, 2
        %v473 = vadd.f32 %v471, %v472
        %v474 = vrot.slane %v473, 1
        %v475 = vadd.f32 %v473, %v474
        %v476 = vrcp.pop 16.0
        %v477 = vmul.f32 %v468, %v476
        %v478 = vmul.f32 %v475, %v476
        %v479 = vmax.f32 %v458, %v460
        %v480 = vrot.slane %v479, 4
        %v481 = vmax.f32 %v479, %v480
        %v482 = vrot.slane %v481, 2
        %v483 = vmax.f32 %v481, %v482
        %v484 = vrot.slane %v483, 1
        %v485 = vmax.f32 %v483, %v484
        %v486 = vmax.f32 %v459, %v461
        %v487 = vrot.slane %v486, 4
        %v488 = vmax.f32 %v486, %v487
        %v489 = vrot.slane %v488, 2
        %v490 = vmax.f32 %v488, %v489
        %v491 = vrot.slane %v490, 1
        %v492 = vmax.f32 %v490, %v491
        %v493 = vld [vmem:[#allocation5] sm:$0xff]
        %v494 = vld [vmem:[#allocation5 + $0x8] sm:$0xff]
        %v495 = vld [vmem:[#allocation5 + $0x10] sm:$0xff]
        %v496 = vld [vmem:[#allocation5 + $0x18] sm:$0xff]
        %v497 = vld [vmem:[#allocation5 + $0x20] sm:$0xff]
        %v498 = vld [vmem:[#allocation5 + $0x28] sm:$0xff]
        %v499 = vld [vmem:[#allocation5 + $0x30] sm:$0xff]
        %v500 = vld [vmem:[#allocation5 + $0x38] sm:$0xff]
        %v501 = vld [vmem:[#allocation5 + $0x40] sm:$0xff]
        %v502 = vld [vmem:[#allocation5 + $0x48] sm:$0xff]
        %v503 = vld [vmem:[#allocation5 + $0x50] sm:$0xff]
        %v504 = vld [vmem:[#allocation5 + $0x58] sm:$0xff]
        %v505 = vld [vmem:[#allocation5 + $0x60] sm:$0xff]
        %v506 = vld [vmem:[#allocation5 + $0x68] sm:$0xff]
        %v507 = vld [vmem:[#allocation5 + $0x70] sm:$0xff]
        %v508 = vld [vmem:[#allocation5 + $0x78] sm:$0xff]
        %v509 = vld [vmem:[#allocation5 + $0x80] sm:$0xff]
        %v510 = vld [vmem:[#allocation5 + $0x88] sm:$0xff]
        %v511 = vld [vmem:[#allocation5 + $0x90] sm:$0xff]
        %v512 = vld [vmem:[#allocation5 + $0x98] sm:$0xff]
        %v513 = vld [vmem:[#allocation5 + $0xa0] sm:$0xff]
        %v514 = vld [vmem:[#allocation5 + $0xa8] sm:$0xff]
        %v515 = vld [vmem:[#allocation5 + $0xb0] sm:$0xff]
        %v516 = vld [vmem:[#allocation5 + $0xb8] sm:$0xff]
        %v517 = vld [vmem:[#allocation5 + $0xc0] sm:$0xff]
        %v518 = vld [vmem:[#allocation5 + $0xc8] sm:$0xff]
        %v519 = vld [vmem:[#allocation5 + $0xd0] sm:$0xff]
        %v520 = vld [vmem:[#allocation5 + $0xd8] sm:$0xff]
        %v521 = vld [vmem:[#allocation5 + $0xe0] sm:$0xff]
        %v522 = vld [vmem:[#allocation5 + $0xe8] sm:$0xff]
        %v523 = vld [vmem:[#allocation5 + $0xf0] sm:$0xff]
        %v524 = vld [vmem:[#allocation5 + $0xf8] sm:$0xff]
        %v525 = vld [vmem:[#allocation5 + $0x100] sm:$0xff]
        %v526 = vld [vmem:[#allocation5 + $0x108] sm:$0xff]
        %v527 = vld [vmem:[#allocation5 + $0x110] sm:$0xff]
        %v528 = vld [vmem:[#allocation5 + $0x118] sm:$0xff]
        %v529 = vld [vmem:[#allocation5 + $0x120] sm:$0xff]
        %v530 = vld [vmem:[#allocation5 + $0x128] sm:$0xff]
        %v531 = vld [vmem:[#allocation5 + $0x130] sm:$0xff]
        %v532 = vld [vmem:[#allocation5 + $0x138] sm:$0xff]
        %v533 = vld [vmem:[#allocation5 + $0x140] sm:$0xff]
        %v534 = vld [vmem:[#allocation5 + $0x148] sm:$0xff]
        %v535 = vld [vmem:[#allocation5 + $0x150] sm:$0xff]
        %v536 = vld [vmem:[#allocation5 + $0x158] sm:$0xff]
        %v537 = vld [vmem:[#allocation5 + $0x160] sm:$0xff]
        %v538 = vld [vmem:[#allocation5 + $0x168] sm:$0xff]
        %v539 = vld [vmem:[#allocation5 + $0x170] sm:$0xff]
        %v540 = vld [vmem:[#allocation5 + $0x178] sm:$0xff]
        %v541 = vld [vmem:[#allocation5 + $0x180] sm:$0xff]
        %v542 = vld [vmem:[#allocation5 + $0x188] sm:$0xff]
        %v543 = vld [vmem:[#allocation5 + $0x190] sm:$0xff]
        %v544 = vld [vmem:[#allocation5 + $0x198] sm:$0xff]
        %v545 = vld [vmem:[#allocation5 + $0x1a0] sm:$0xff]
        %v546 = vld [vmem:[#allocation5 + $0x1a8] sm:$0xff]
        %v547 = vld [vmem:[#allocation5 + $0x1b0] sm:$0xff]
        %v548 = vld [vmem:[#allocation5 + $0x1b8] sm:$0xff]
        %v549 = vld [vmem:[#allocation5 + $0x1c0] sm:$0xff]
        %v550 = vld [vmem:[#allocation5 + $0x1c8] sm:$0xff]
        %v551 = vld [vmem:[#allocation5 + $0x1d0] sm:$0xff]
        %v552 = vld [vmem:[#allocation5 + $0x1d8] sm:$0xff]
        %v553 = vld [vmem:[#allocation5 + $0x1e0] sm:$0xff]
        %v554 = vld [vmem:[#allocation5 + $0x1e8] sm:$0xff]
        %v555 = vld [vmem:[#allocation5 + $0x1f0] sm:$0xff]
        %v556 = vld [vmem:[#allocation5 + $0x1f8] sm:$0xff]
        %v557 = vld [vmem:[#allocation5 + $0x200] sm:$0xff]
        %v558 = vld [vmem:[#allocation5 + $0x208] sm:$0xff]
        %v559 = vld [vmem:[#allocation5 + $0x210] sm:$0xff]
        %v560 = vld [vmem:[#allocation5 + $0x218] sm:$0xff]
        %v561 = vld [vmem:[#allocation5 + $0x220] sm:$0xff]
        %v562 = vld [vmem:[#allocation5 + $0x228] sm:$0xff]
        %v563 = vld [vmem:[#allocation5 + $0x230] sm:$0xff]
        %v564 = vld [vmem:[#allocation5 + $0x238] sm:$0xff]
        %v565 = vld [vmem:[#allocation5 + $0x240] sm:$0xff]
        %v566 = vld [vmem:[#allocation5 + $0x248] sm:$0xff]
        %v567 = vld [vmem:[#allocation5 + $0x250] sm:$0xff]
        %v568 = vld [vmem:[#allocation5 + $0x258] sm:$0xff]
        %v569 = vld [vmem:[#allocation5 + $0x260] sm:$0xff]
        %v570 = vld [vmem:[#allocation5 + $0x268] sm:$0xff]
        %v571 = vld [vmem:[#allocation5 + $0x270] sm:$0xff]
        %v572 = vld [vmem:[#allocation5 + $0x278] sm:$0xff]
        %v573 = vld [vmem:[#allocation5 + $0x280] sm:$0xff]
        %v574 = vld [vmem:[#allocation5 + $0x288] sm:$0xff]
        %v575 = vld [vmem:[#allocation5 + $0x290] sm:$0xff]
        %v576 = vld [vmem:[#allocation5 + $0x298] sm:$0xff]
        %v577 = vld [vmem:[#allocation5 + $0x2a0] sm:$0xff]
        %v578 = vld [vmem:[#allocation5 + $0x2a8] sm:$0xff]
        %v579 = vld [vmem:[#allocation5 + $0x2b0] sm:$0xff]
        %v580 = vld [vmem:[#allocation5 + $0x2b8] sm:$0xff]
        %v581 = vld [vmem:[#allocation5 + $0x2c0] sm:$0xff]
        %v582 = vld [vmem:[#allocation5 + $0x2c8] sm:$0xff]
        %v583 = vld [vmem:[#allocation5 + $0x2d0] sm:$0xff]
        %v584 = vld [vmem:[#allocation5 + $0x2d8] sm:$0xff]
        %v585 = vld [vmem:[#allocation5 + $0x2e0] sm:$0xff]
        %v586 = vld [vmem:[#allocation5 + $0x2e8] sm:$0xff]
        %v587 = vld [vmem:[#allocation5 + $0x2f0] sm:$0xff]
        %v588 = vld [vmem:[#allocation5 + $0x2f8] sm:$0xff]
        %v589 = vld [vmem:[#allocation5 + $0x300] sm:$0xff]
        %v590 = vld [vmem:[#allocation5 + $0x308] sm:$0xff]
        %v591 = vld [vmem:[#allocation5 + $0x310] sm:$0xff]
        %v592 = vld [vmem:[#allocation5 + $0x318] sm:$0xff]
        %v593 = vld [vmem:[#allocation5 + $0x320] sm:$0xff]
        %v594 = vld [vmem:[#allocation5 + $0x328] sm:$0xff]
        %v595 = vld [vmem:[#allocation5 + $0x330] sm:$0xff]
        %v596 = vld [vmem:[#allocation5 + $0x338] sm:$0xff]
        %v597 = vld [vmem:[#allocation5 + $0x340] sm:$0xff]
        %v598 = vld [vmem:[#allocation5 + $0x348] sm:$0xff]
        %v599 = vld [vmem:[#allocation5 + $0x350] sm:$0xff]
        %v600 = vld [vmem:[#allocation5 + $0x358] sm:$0xff]
        %v601 = vld [vmem:[#allocation5 + $0x360] sm:$0xff]
        %v602 = vld [vmem:[#allocation5 + $0x368] sm:$0xff]
        %v603 = vld [vmem:[#allocation5 + $0x370] sm:$0xff]
        %v604 = vld [vmem:[#allocation5 + $0x378] sm:$0xff]
        %v605 = vld [vmem:[#allocation5 + $0x380] sm:$0xff]
        %v606 = vld [vmem:[#allocation5 + $0x388] sm:$0xff]
        %v607 = vld [vmem:[#allocation5 + $0x390] sm:$0xff]
        %v608 = vld [vmem:[#allocation5 + $0x398] sm:$0xff]
        %v609 = vld [vmem:[#allocation5 + $0x3a0] sm:$0xff]
        %v610 = vld [vmem:[#allocation5 + $0x3a8] sm:$0xff]
        %v611 = vld [vmem:[#allocation5 + $0x3b0] sm:$0xff]
        %v612 = vld [vmem:[#allocation5 + $0x3b8] sm:$0xff]
        %v613 = vld [vmem:[#allocation5 + $0x3c0] sm:$0xff]
        %v614 = vld [vmem:[#allocation5 + $0x3c8] sm:$0xff]
        %v615 = vld [vmem:[#allocation5 + $0x3d0] sm:$0xff]
        %v616 = vld [vmem:[#allocation5 + $0x3d8] sm:$0xff]
        %v617 = vld [vmem:[#allocation5 + $0x3e0] sm:$0xff]
        %v618 = vld [vmem:[#allocation5 + $0x3e8] sm:$0xff]
        %v619 = vld [vmem:[#allocation5 + $0x3f0] sm:$0xff]
        %v620 = vld [vmem:[#allocation5 + $0x3f8] sm:$0xff]
        %621 = vmatprep.subr.mxu0 %v494
        %622 = vmatpush1.msra.mxu0 %v493
        %623 = vmatprep.subr.mxu0 %v496
        %624 = vmatpush1.msra.mxu0 %v495
        %625 = vmatprep.subr.mxu0 %v498
        %626 = vmatpush1.msra.mxu0 %v497
        %627 = vmatprep.subr.mxu0 %v500
        %628 = vmatpush1.msra.mxu0 %v499
        %629 = vmatprep.subr.mxu0 %v502
        %630 = vmatpush1.msra.mxu0 %v501
        %631 = vmatprep.subr.mxu0 %v504
        %632 = vmatpush1.msra.mxu0 %v503
        %633 = vmatprep.subr.mxu0 %v506
        %634 = vmatpush1.msra.mxu0 %v505
        %635 = vmatprep.subr.mxu0 %v508
        %636 = vmatpush1.msra.mxu0 %v507
        %637 = vmatprep.subr.mxu0 %v510
        %638 = vmatpush1.msra.mxu0 %v509
        %639 = vmatprep.subr.mxu0 %v512
        %640 = vmatpush1.msra.mxu0 %v511
        %641 = vmatprep.subr.mxu0 %v514
        %642 = vmatpush1.msra.mxu0 %v513
        %643 = vmatprep.subr.mxu0 %v516
        %644 = vmatpush1.msra.mxu0 %v515
        %645 = vmatprep.subr.mxu0 %v518
        %646 = vmatpush1.msra.mxu0 %v517
        %647 = vmatprep.subr.mxu0 %v520
        %648 = vmatpush1.msra.mxu0 %v519
        %649 = vmatprep.subr.mxu0 %v522
        %650 = vmatpush1.msra.mxu0 %v521
        %651 = vmatprep.subr.mxu0 %v524
        %652 = vmatpush1.msra.mxu0 %v523
        %653 = vmatprep.subr.mxu0 %v526
        %654 = vmatpush1.msra.mxu0 %v525
        %655 = vmatprep.subr.mxu0 %v528
        %656 = vmatpush1.msra.mxu0 %v527
        %657 = vmatprep.subr.mxu0 %v530
        %658 = vmatpush1.msra.mxu0 %v529
        %659 = vmatprep.subr.mxu0 %v532
        %660 = vmatpush1.msra.mxu0 %v531
        %661 = vmatprep.subr.mxu0 %v534
        %662 = vmatpush1.msra.mxu0 %v533
        %663 = vmatprep.subr.mxu0 %v536
        %664 = vmatpush1.msra.mxu0 %v535
        %665 = vmatprep.subr.mxu0 %v538
        %666 = vmatpush1.msra.mxu0 %v537
        %667 = vmatprep.subr.mxu0 %v540
        %668 = vmatpush1.msra.mxu0 %v539
        %669 = vmatprep.subr.mxu0 %v542
        %670 = vmatpush1.msra.mxu0 %v541
        %671 = vmatprep.subr.mxu0 %v544
        %672 = vmatpush1.msra.mxu0 %v543
        %673 = vmatprep.subr.mxu0 %v546
        %674 = vmatpush1.msra.mxu0 %v545
        %675 = vmatprep.subr.mxu0 %v548
        %676 = vmatpush1.msra.mxu0 %v547
        %677 = vmatprep.subr.mxu0 %v550
        %678 = vmatpush1.msra.mxu0 %v549
        %679 = vmatprep.subr.mxu0 %v552
        %680 = vmatpush1.msra.mxu0 %v551
        %681 = vmatprep.subr.mxu0 %v554
        %682 = vmatpush1.msra.mxu0 %v553
        %683 = vmatprep.subr.mxu0 %v556
        %684 = vmatpush1.msra.mxu0 %v555
        %685 = vmatprep.mubr.f32.mxu0 %v478
        %686 = vmatmul.mubr.f32.gmra.mrb[0].mxu0 %v477
        %v687 = vpop.f32.mrb[0].mxu0
        %v688 = vadd.f32 0.0, %v687
        %v689 = vpop.f32.mrb[0].mxu0
        %v690 = vadd.f32 0.0, %v689
        %691 = vdwg.mxu0
        %692 = vmatprep.subr.mxu0 %v558
        %693 = vmatpush1.msra.mxu0 %v557
        %694 = vmatprep.subr.mxu0 %v560
        %695 = vmatpush1.msra.mxu0 %v559
        %696 = vmatprep.subr.mxu0 %v562
        %697 = vmatpush1.msra.mxu0 %v561
        %698 = vmatprep.subr.mxu0 %v564
        %699 = vmatpush1.msra.mxu0 %v563
        %700 = vmatprep.subr.mxu0 %v566
        %701 = vmatpush1.msra.mxu0 %v565
        %702 = vmatprep.subr.mxu0 %v568
        %703 = vmatpush1.msra.mxu0 %v567
        %704 = vmatprep.subr.mxu0 %v570
        %705 = vmatpush1.msra.mxu0 %v569
        %706 = vmatprep.subr.mxu0 %v572
        %707 = vmatpush1.msra.mxu0 %v571
        %708 = vmatprep.subr.mxu0 %v574
        %709 = vmatpush1.msra.mxu0 %v573
        %710 = vmatprep.subr.mxu0 %v576
        %711 = vmatpush1.msra.mxu0 %v575
        %712 = vmatprep.subr.mxu0 %v578
        %713 = vmatpush1.msra.mxu0 %v577
        %714 = vmatprep.subr.mxu0 %v580
        %715 = vmatpush1.msra.mxu0 %v579
        %716 = vmatprep.subr.mxu0 %v582
        %717 = vmatpush1.msra.mxu0 %v581
        %718 = vmatprep.subr.mxu0 %v584
        %719 = vmatpush1.msra.mxu0 %v583
        %720 = vmatprep.subr.mxu0 %v586
        %721 = vmatpush1.msra.mxu0 %v585
        %722 = vmatprep.subr.mxu0 %v588
        %723 = vmatpush1.msra.mxu0 %v587
        %724 = vmatprep.subr.mxu0 %v590
        %725 = vmatpush1.msra.mxu0 %v589
        %726 = vmatprep.subr.mxu0 %v592
        %727 = vmatpush1.msra.mxu0 %v591
        %728 = vmatprep.subr.mxu0 %v594
        %729 = vmatpush1.msra.mxu0 %v593
        %730 = vmatprep.subr.mxu0 %v596
        %731 = vmatpush1.msra.mxu0 %v595
        %732 = vmatprep.subr.mxu0 %v598
        %733 = vmatpush1.msra.mxu0 %v597
        %734 = vmatprep.subr.mxu0 %v600
        %735 = vmatpush1.msra.mxu0 %v599
        %736 = vmatprep.subr.mxu0 %v602
        %737 = vmatpush1.msra.mxu0 %v601
        %738 = vmatprep.subr.mxu0 %v604
        %739 = vmatpush1.msra.mxu0 %v603
        %740 = vmatprep.subr.mxu0 %v606
        %741 = vmatpush1.msra.mxu0 %v605
        %742 = vmatprep.subr.mxu0 %v608
        %743 = vmatpush1.msra.mxu0 %v607
        %744 = vmatprep.subr.mxu0 %v610
        %745 = vmatpush1.msra.mxu0 %v609
        %746 = vmatprep.subr.mxu0 %v612
        %747 = vmatpush1.msra.mxu0 %v611
        %748 = vmatprep.subr.mxu0 %v614
        %749 = vmatpush1.msra.mxu0 %v613
        %750 = vmatprep.subr.mxu0 %v616
        %751 = vmatpush1.msra.mxu0 %v615
        %752 = vmatprep.subr.mxu0 %v618
        %753 = vmatpush1.msra.mxu0 %v617
        %754 = vmatprep.subr.mxu0 %v620
        %755 = vmatpush1.msra.mxu0 %v619
        %756 = vmatprep.mubr.f32.mxu0 %v492
        %757 = vmatmul.mubr.f32.gmra.mrb[0].mxu0 %v485
        %v758 = vpop.f32.mrb[0].mxu0
        %v759 = vadd.f32 %v688, %v758
        %v760 = vpop.f32.mrb[0].mxu0
        %v761 = vadd.f32 %v690, %v760
        %762 = vdwg.mxu0
        %v763 = vxor.u32 %v759, 2147483648
        %v764 = vxor.u32 %v761, 2147483648
        %v765 = vmul.f32 %v763, 1.442695
        %v766 = vpow.pop %v765
        %v767 = vmul.f32 %v764, 1.442695
        %v768 = vpow.pop %v767
        %v769 = vadd.f32 %v766, 1.0
        %v770 = vadd.f32 %v768, 1.0
        %v771 = vrcp.pop %v769
        %v772 = vmul.f32 1.0, %v771
        %v773 = vrcp.pop %v770
        %v774 = vmul.f32 1.0, %v773
        %v775 = vlaneseq
        %v776 = vshrl.u32 %v775, 7
        %v777 = vsub.s32 0, %v776
        %v778 = vrot.slane %v772, %v777
        %v779 = vlaneseq
        %v780 = vshrl.u32 %v779, 7
        %v781 = vsub.s32 0, %v780
        %v782 = vrot.slane %v774, %v781
        %v783 = vmul.f32 %v458, %v778
        %v784 = vmul.f32 %v459, %v782
        %v785 = vmul.f32 %v460, %v778
        %v786 = vmul.f32 %v461, %v782
        %v787 = vld [vmem:[%s4] sm:$0xff]
        %v788 = vld [vmem:[%s4 + $0x8] sm:$0xff]
        %v790 = vsel %vm288, %v787, 0
        %v793 = vsel %vm288, %v788, 0
        %795 = vmatprep.subr.mxu0 %v784
        %796 = vmatpush1.msra.mxu0 %v783
        %797 = vmatprep.subr.mxu0 %v786
        %798 = vmatpush1.msra.mxu0 %v785
        %799 = vmatprep.subr.mxu0 0.0
        %800 = vmatpush1.msra.mxu0 0.0
        %801 = vmatprep.subr.mxu0 0.0
        %802 = vmatpush1.msra.mxu0 0.0
        %803 = vmatprep.subr.mxu0 0.0
        %804 = vmatpush1.msra.mxu0 0.0
        %805 = vmatprep.subr.mxu0 0.0
        %806 = vmatpush1.msra.mxu0 0.0
        %807 = vmatprep.subr.mxu0 0.0
        %808 = vmatpush1.msra.mxu0 0.0
        %809 = vmatprep.subr.mxu0 0.0
        %810 = vmatpush1.msra.mxu0 0.0
        %811 = vmatprep.subr.mxu0 0.0
        %812 = vmatpush1.msra.mxu0 0.0
        %813 = vmatprep.subr.mxu0 0.0
        %814 = vmatpush1.msra.mxu0 0.0
        %815 = vmatprep.subr.mxu0 0.0
        %816 = vmatpush1.msra.mxu0 0.0
        %817 = vmatprep.subr.mxu0 0.0
        %818 = vmatpush1.msra.mxu0 0.0
        %819 = vmatprep.subr.mxu0 0.0
        %820 = vmatpush1.msra.mxu0 0.0
        %821 = vmatprep.subr.mxu0 0.0
        %822 = vmatpush1.msra.mxu0 0.0
        %823 = vmatprep.subr.mxu0 0.0
        %824 = vmatpush1.msra.mxu0 0.0
        %825 = vmatprep.subr.mxu0 0.0
        %826 = vmatpush1.msra.mxu0 0.0
        %827 = vmatprep.subr.mxu0 0.0
        %828 = vmatpush1.msra.mxu0 0.0
        %829 = vmatprep.subr.mxu0 0.0
        %830 = vmatpush1.msra.mxu0 0.0
        %831 = vmatprep.subr.mxu0 0.0
        %832 = vmatpush1.msra.mxu0 0.0
        %833 = vmatprep.subr.mxu0 0.0
        %834 = vmatpush1.msra.mxu0 0.0
        %835 = vmatprep.subr.mxu0 0.0
        %836 = vmatpush1.msra.mxu0 0.0
        %837 = vmatprep.subr.mxu0 0.0
        %838 = vmatpush1.msra.mxu0 0.0
        %839 = vmatprep.subr.mxu0 0.0
        %840 = vmatpush1.msra.mxu0 0.0
        %841 = vmatprep.subr.mxu0 0.0
        %842 = vmatpush1.msra.mxu0 0.0
        %843 = vmatprep.subr.mxu0 0.0
        %844 = vmatpush1.msra.mxu0 0.0
        %845 = vmatprep.subr.mxu0 0.0
        %846 = vmatpush1.msra.mxu0 0.0
        %847 = vmatprep.subr.mxu0 0.0
        %848 = vmatpush1.msra.mxu0 0.0
        %849 = vmatprep.subr.mxu0 0.0
        %850 = vmatpush1.msra.mxu0 0.0
        %851 = vmatprep.subr.mxu0 0.0
        %852 = vmatpush1.msra.mxu0 0.0
        %853 = vmatprep.subr.mxu0 0.0
        %854 = vmatpush1.msra.mxu0 0.0
        %855 = vmatprep.subr.mxu0 0.0
        %856 = vmatpush1.msra.mxu0 0.0
        %857 = vmatprep.subr.mxu0 0.0
        %858 = vmatpush1.msra.mxu0 0.0
        %859 = vmatprep.mubr.f32.mxu0 0.0
        %860 = vmatmul.mubr.f32.gmra.mrb[0].mxu0 %v790
        %v861 = vpop.f32.mrb[0].mxu0
        %v862 = vadd.f32 0.0, %v861
        %v863 = vpop.f32.mrb[0].mxu0
        %v864 = vadd.f32 0.0, %v863
        %865 = vmatprep.mubr.f32.mxu0 0.0
        %866 = vmatmul.mubr.f32.gmra.mrb[0].mxu0 %v793
        %v867 = vpop.f32.mrb[0].mxu0
        %v868 = vadd.f32 0.0, %v867
        %v869 = vpop.f32.mrb[0].mxu0
        %v870 = vadd.f32 0.0, %v869
        %871 = vdwg.mxu0
        %872 = vmatprep.subr.mxu0 %v864
        %873 = vmatpush1.xpose.msra.mxu0 %v862
        %874 = vmatprep.subr.mxu0 0.0
        %875 = vmatpush1.xpose.msra.mxu0 0.0
        %876 = vmatprep.subr.mxu0 0.0
        %877 = vmatpush1.xpose.msra.mxu0 0.0
        %878 = vmatprep.subr.mxu0 0.0
        %879 = vmatpush1.xpose.msra.mxu0 0.0
        %880 = vmatprep.subr.mxu0 0.0
        %881 = vmatpush1.xpose.msra.mxu0 0.0
        %882 = vmatprep.subr.mxu0 0.0
        %883 = vmatpush1.xpose.msra.mxu0 0.0
        %884 = vmatprep.subr.mxu0 0.0
        %885 = vmatpush1.xpose.msra.mxu0 0.0
        %886 = vmatprep.subr.mxu0 0.0
        %887 = vmatpush1.xpose.msra.mxu0 0.0
        %888 = vmatprep.subr.mxu0 0.0
        %889 = vmatpush1.xpose.msra.mxu0 0.0
        %890 = vmatprep.subr.mxu0 0.0
        %891 = vmatpush1.xpose.msra.mxu0 0.0
        %892 = vmatprep.subr.mxu0 0.0
        %893 = vmatpush1.xpose.msra.mxu0 0.0
        %894 = vmatprep.subr.mxu0 0.0
        %895 = vmatpush1.xpose.msra.mxu0 0.0
        %896 = vmatprep.subr.mxu0 0.0
        %897 = vmatpush1.xpose.msra.mxu0 0.0
        %898 = vmatprep.subr.mxu0 0.0
        %899 = vmatpush1.xpose.msra.mxu0 0.0
        %900 = vmatprep.subr.mxu0 0.0
        %901 = vmatpush1.xpose.msra.mxu0 0.0
        %902 = vmatprep.subr.mxu0 0.0
        %903 = vmatpush1.xpose.msra.mxu0 0.0
        %904 = vmatprep.subr.mxu0 0.0
        %905 = vmatpush1.xpose.msra.mxu0 0.0
        %906 = vmatprep.subr.mxu0 0.0
        %907 = vmatpush1.xpose.msra.mxu0 0.0
        %908 = vmatprep.subr.mxu0 0.0
        %909 = vmatpush1.xpose.msra.mxu0 0.0
        %910 = vmatprep.subr.mxu0 0.0
        %911 = vmatpush1.xpose.msra.mxu0 0.0
        %912 = vmatprep.subr.mxu0 0.0
        %913 = vmatpush1.xpose.msra.mxu0 0.0
        %914 = vmatprep.subr.mxu0 0.0
        %915 = vmatpush1.xpose.msra.mxu0 0.0
        %916 = vmatprep.subr.mxu0 0.0
        %917 = vmatpush1.xpose.msra.mxu0 0.0
        %918 = vmatprep.subr.mxu0 0.0
        %919 = vmatpush1.xpose.msra.mxu0 0.0
        %920 = vmatprep.subr.mxu0 0.0
        %921 = vmatpush1.xpose.msra.mxu0 0.0
        %922 = vmatprep.subr.mxu0 0.0
        %923 = vmatpush1.xpose.msra.mxu0 0.0
        %924 = vmatprep.subr.mxu0 0.0
        %925 = vmatpush1.xpose.msra.mxu0 0.0
        %926 = vmatprep.subr.mxu0 0.0
        %927 = vmatpush1.xpose.msra.mxu0 0.0
        %928 = vmatprep.subr.mxu0 0.0
        %929 = vmatpush1.xpose.msra.mxu0 0.0
        %930 = vmatprep.subr.mxu0 0.0
        %931 = vmatpush1.xpose.msra.mxu0 0.0
        %932 = vmatprep.subr.mxu0 0.0
        %933 = vmatpush1.xpose.msra.mxu0 0.0
        %934 = vmatprep.subr.mxu0 0.0
        %935 = vmatpush1.xpose.msra.mxu0 0.0
        %936 = vmatprep.mubr.f32.mxu0 %v864
        %937 = vmatmul.mubr.f32.gmra.mrb[0].mxu0 %v862
        %v938 = vpop.f32.mrb[0].mxu0
        %v939 = vadd.f32 0.0, %v938
        %v940 = vpop.f32.mrb[0].mxu0
        %941 = vdwg.mxu0
        %942 = vmatprep.subr.mxu0 %v870
        %943 = vmatpush1.xpose.msra.mxu0 %v868
        %944 = vmatprep.subr.mxu0 0.0
        %945 = vmatpush1.xpose.msra.mxu0 0.0
        %946 = vmatprep.subr.mxu0 0.0
        %947 = vmatpush1.xpose.msra.mxu0 0.0
        %948 = vmatprep.subr.mxu0 0.0
        %949 = vmatpush1.xpose.msra.mxu0 0.0
        %950 = vmatprep.subr.mxu0 0.0
        %951 = vmatpush1.xpose.msra.mxu0 0.0
        %952 = vmatprep.subr.mxu0 0.0
        %953 = vmatpush1.xpose.msra.mxu0 0.0
        %954 = vmatprep.subr.mxu0 0.0
        %955 = vmatpush1.xpose.msra.mxu0 0.0
        %956 = vmatprep.subr.mxu0 0.0
        %957 = vmatpush1.xpose.msra.mxu0 0.0
        %958 = vmatprep.subr.mxu0 0.0
        %959 = vmatpush1.xpose.msra.mxu0 0.0
        %960 = vmatprep.subr.mxu0 0.0
        %961 = vmatpush1.xpose.msra.mxu0 0.0
        %962 = vmatprep.subr.mxu0 0.0
        %963 = vmatpush1.xpose.msra.mxu0 0.0
        %964 = vmatprep.subr.mxu0 0.0
        %965 = vmatpush1.xpose.msra.mxu0 0.0
        %966 = vmatprep.subr.mxu0 0.0
        %967 = vmatpush1.xpose.msra.mxu0 0.0
        %968 = vmatprep.subr.mxu0 0.0
        %969 = vmatpush1.xpose.msra.mxu0 0.0
        %970 = vmatprep.subr.mxu0 0.0
        %971 = vmatpush1.xpose.msra.mxu0 0.0
        %972 = vmatprep.subr.mxu0 0.0
        %973 = vmatpush1.xpose.msra.mxu0 0.0
        %974 = vmatprep.subr.mxu0 0.0
        %975 = vmatpush1.xpose.msra.mxu0 0.0
        %976 = vmatprep.subr.mxu0 0.0
        %977 = vmatpush1.xpose.msra.mxu0 0.0
        %978 = vmatprep.subr.mxu0 0.0
        %979 = vmatpush1.xpose.msra.mxu0 0.0
        %980 = vmatprep.subr.mxu0 0.0
        %981 = vmatpush1.xpose.msra.mxu0 0.0
        %982 = vmatprep.subr.mxu0 0.0
        %983 = vmatpush1.xpose.msra.mxu0 0.0
        %984 = vmatprep.subr.mxu0 0.0
        %985 = vmatpush1.xpose.msra.mxu0 0.0
        %986 = vmatprep.subr.mxu0 0.0
        %987 = vmatpush1.xpose.msra.mxu0 0.0
        %988 = vmatprep.subr.mxu0 0.0
        %989 = vmatpush1.xpose.msra.mxu0 0.0
        %990 = vmatprep.subr.mxu0 0.0
        %991 = vmatpush1.xpose.msra.mxu0 0.0
        %992 = vmatprep.subr.mxu0 0.0
        %993 = vmatpush1.xpose.msra.mxu0 0.0
        %994 = vmatprep.subr.mxu0 0.0
        %995 = vmatpush1.xpose.msra.mxu0 0.0
        %996 = vmatprep.subr.mxu0 0.0
        %997 = vmatpush1.xpose.msra.mxu0 0.0
        %998 = vmatprep.subr.mxu0 0.0
        %999 = vmatpush1.xpose.msra.mxu0 0.0
        %1000 = vmatprep.subr.mxu0 0.0
        %1001 = vmatpush1.xpose.msra.mxu0 0.0
        %1002 = vmatprep.subr.mxu0 0.0
        %1003 = vmatpush1.xpose.msra.mxu0 0.0
        %1004 = vmatprep.subr.mxu0 0.0
        %1005 = vmatpush1.xpose.msra.mxu0 0.0
        %1006 = vmatprep.mubr.f32.mxu0 %v870
        %1007 = vmatmul.mubr.f32.gmra.mrb[0].mxu0 %v868
        %v1008 = vpop.f32.mrb[0].mxu0
        %v1009 = vadd.f32 0.0, %v1008
        %v1010 = vpop.f32.mrb[0].mxu0
        %1011 = vdwg.mxu0
        %v1012 = vsub.f32 %v1009, %v939
        %v1013 = vmul.f32 %v1012, 0.00048828125
        %v1014 = vmul.f32 %v1013, %v1013
        %vm1015 = vcmask 64512
        %v1016 = vsel %vm1015, %v1014, 0.0
        %1017 = vadd.xlane.f32.xlu0 %v1016
        %v1018 = vpop.xlane.xlu0 %1017
        %v1019 = vrot.slane %v1018, 4
        %v1020 = vadd.f32 %v1018, %v1019
        %v1021 = vrot.slane %v1020, 2
        %v1022 = vadd.f32 %v1020, %v1021
        %v1023 = vrot.slane %v1022, 1
        %v1024 = vadd.f32 %v1022, %v1023
        %v1025 = vadd.f32 %v1024, 0.0
        %1026 = vst [vmem:[%s257] sm:$0xff] %v1025
        %s1027 = sand.u32 %s141, 1
        %s1028 = scalar_lea.sflag [#allocation4], %s1027
        %s1029 = sand.u32 %s141, 1
        %s1030 = smul.addr %s1029, 8
        %s1031 = scalar_lea.vmem [#allocation7], %s1030
        // Predicated region
        $region49: #{tpu_custom_call.1} parent=39 // pred_check
          %p1032 = pneg %p151
        $region50: #{tpu_custom_call.1} parent=39 // pred_check_branch
          %1034 = sbr.rel (%p1032) target = $region52
        $region51: #{tpu_custom_call.1} parent=39 // pred_region
          %s1036 = ssub.s32 128, 128
          %1037 = vsyncadd %s1028, %s1036
          %s1038 = smul.addr %s23, 128
          %s1039 = scalar_lea.hbm %s5, %s1038
          %s1041 = sshll.u32 %s1031, 4
          %s1042 = int_to_ptr.vmem [resolvable:$true] %s1041
          %1044 = dma.vmem_to_hbm [thread:$0]  %s1042, 128, %s1039, %s1028
        $region52: #{tpu_custom_call.1} parent=39 // pred_fallthru
          _
      $region40: #{tpu_custom_call.1} parent=5 // pred_fallthru
        _
      %p1045 = scmp.le.s32.totalorder 2, %s18
      // Predicated region
      $region53: #{tpu_custom_call.1} parent=5 // pred_check
        %p1046 = pneg %p1045
      $region54: #{tpu_custom_call.1} parent=5 // pred_check_branch
        %1048 = sbr.rel (%p1046) target = $region56
      $region55: #{tpu_custom_call.1} parent=5 // pred_region
        %s1049 = ssub.s32 %s18, 2
        // Predicated region
        $region57: #{tpu_custom_call.1} parent=55 // pred_check
          %p1050 = pneg %p157
        $region58: #{tpu_custom_call.1} parent=55 // pred_check_branch
          %1052 = sbr.rel (%p1050) target = $region60
        $region59: #{tpu_custom_call.1} parent=55 // pred_region
          %s1053 = sand.u32 %s142, 1
          %s1054 = scalar_lea.sflag [#allocation4], %s1053
          %s1055 = sand.u32 %s142, 1
          %s1056 = smul.addr %s1055, 8
          %s1057 = scalar_lea.vmem [#allocation7], %s1056
          %1058 = dma.done %s1054, 128
        $region60: #{tpu_custom_call.1} parent=55 // pred_fallthru
          _
      $region56: #{tpu_custom_call.1} parent=5 // pred_fallthru
        _
    $region6: #{tpu_custom_call.1} parent=1 // loop_footer
      %s22 = sadd.s32 1, %s18
    $region7: #{tpu_custom_call.1} parent=1 // loop_footer_branch
      %17 = sbr.rel target = $region3
    $region8: #{tpu_custom_call.1} parent=1 // loop_exit
      _
    %1059 = vsyncpa [#allocation3], 1
    %s1060 = scalar_lea.sflag [#allocation3], 1
    %1061 = vsyncpa %s1060, 1
    %1062 = vsyncpa [#allocation6], 1
    %1063 = vsyncpa [#allocation4], 1
    %s1064 = scalar_lea.sflag [#allocation4], 1
    %1065 = vsyncpa %s1064, 1

</llo_original>
